<compile_context>
chip_gen: v7x
topology: tpu7x:2x2x1
jax: 0.10.0
libtpu: 0.0.40
codegen_flags: <defaults>
</compile_context>

<pallas_src>
import functools
import math

import jax
import jax.numpy as jnp
from jax.experimental import pallas as pl
from jax.experimental.pallas import tpu as pltpu


def _focal_kernel(x_ref, y_ref, alpha_ref, sum_ref, cnt_ref, *,
                  gamma, ignore_index, n_pos, tile_pos):
    t = pl.program_id(1)

    x = x_ref[0].astype(jnp.float32)            # (C, T): classes on sublanes
    y = y_ref[0]                                # (1, T) int32 labels
    alpha = alpha_ref[...].astype(jnp.float32)  # (C, 1) class weights

    # Numerically-stable log-softmax pieces over the class (sublane) axis.
    # log_p itself is never materialized (saves a full (C,T) live array).
    m = jnp.max(x, axis=0, keepdims=True)                            # (1, T)
    shifted = x - m                                                  # (C, T)
    lse = jnp.log(jnp.sum(jnp.exp(shifted), axis=0, keepdims=True))  # (1, T)

    # Gather shifted[y] and alpha[y] via one-hot select + sublane (XLU) reduce.
    cls = jax.lax.broadcasted_iota(jnp.int32, shifted.shape, 0)      # (C, T)
    onehot = cls == y                                                # (C, T)
    log_pt = jnp.sum(jnp.where(onehot, shifted, 0.0), axis=0,
                     keepdims=True) - lse                            # (1, T)
    a_y = jnp.sum(jnp.where(onehot, alpha, 0.0), axis=0, keepdims=True)

    # valid = not ignored AND inside the un-padded position range.
    pos = t * tile_pos + jax.lax.broadcasted_iota(jnp.int32, y.shape, 1)
    valid = (y != ignore_index) & (pos < n_pos)                      # (1, T)

    ce = -a_y * log_pt
    if gamma == 0.0:
        loss = jnp.where(valid, ce, 0.0)
    else:
        pt = jnp.exp(log_pt)
        one_minus_pt = jnp.maximum(1.0 - pt, 0.0)  # clamp rounding past 1.0
        if float(gamma).is_integer() and 0.0 < gamma <= 8.0:
            focal = one_minus_pt
            for _ in range(int(gamma) - 1):
                focal = focal * one_minus_pt
        else:
            focal = jnp.power(one_minus_pt, gamma)
        loss = jnp.where(valid, focal * ce, 0.0)

    # Per-tile partials, broadcast across a full (8,128) vreg for an aligned,
    # unmasked store; the wrapper reads lane [0,0] of each tile and reduces.
    sum_ref[...] = jnp.broadcast_to(jnp.sum(loss), (1, 1, 8, 128))
    cnt_ref[...] = jnp.broadcast_to(jnp.sum(valid.astype(jnp.float32)),
                                    (1, 1, 8, 128))


def _pick_tile(c, s, block_bytes, vmem_limit_bytes):
    """Position-tile size from a sublane-padding-aware VMEM estimate."""
    c_pad = -(-c // 8) * 8
    # Per position: double-buffered logits + labels (both padded to 8 sublanes)
    # plus ~4 live (c_pad, T) f32 temporaries in the log-softmax/one-hot chain.
    per_pos = (2 + 4) * c_pad * 4 + 2 * 8 * 4
    t = (vmem_limit_bytes // 2) // per_pos
    if block_bytes is not None:            # user override (e.g. tests)
        t = min(t, block_bytes // (c * 4))
    t = max(128, (t // 128) * 128)
    if s <= t:
        return s, 1                        # full extent: always a legal block
    return t, -(-s // t)


def focal_loss(x, y, alpha=None, *, gamma=0.0, reduction="mean",
               ignore_index=-100, block_bytes=None,
               vmem_limit_bytes=32 * 1024 * 1024):
    """Pallas focal loss (forward).

    x: (B, C) or (B, C, d1, ..., dK) float logits (any float dtype; upcast in-kernel)
    y: (B,)  or (B, d1, ..., dK)    int class labels
    alpha: optional (C,) float class weights (None -> unweighted)
    """
    if reduction not in ("mean", "sum"):
        # TODO(synk): reduction='none' returns a dynamically-sized (unignored rows)
        # vector in PyTorch; not expressible as a static-shape Pallas output here.
        raise ValueError("Only 'mean' and 'sum' reductions are supported.")

    if x.ndim > 2:
        b, c = x.shape[0], x.shape[1]
        s = math.prod(x.shape[2:])
        x3 = x.reshape(b, c, s)          # metadata-only reshape, no HBM pass
        y3 = y.reshape(b, 1, s)
    else:
        n_rows, c = x.shape
        # Lane-dense layout needs classes on sublanes: one small transpose.
        # TODO(synk): a class-last kernel variant would avoid this transpose for
        # 2-D inputs with large C.
        x3 = x.T.reshape(1, c, n_rows)
        y3 = y.reshape(1, 1, n_rows)
        b, s = 1, n_rows
    y3 = y3.astype(jnp.int32)

    if alpha is None:
        alpha = jnp.ones((c,), dtype=jnp.float32)
    alpha2 = alpha.astype(jnp.float32).reshape(c, 1)

    tile, n_t = _pick_tile(c, s, block_bytes, vmem_limit_bytes)

    kernel = functools.partial(_focal_kernel, gamma=float(gamma),
                               ignore_index=int(ignore_index),
                               n_pos=int(s), tile_pos=int(tile))

    part_sum, part_cnt = pl.pallas_call(
        kernel,
        out_shape=(jax.ShapeDtypeStruct((b, n_t, 8, 128), jnp.float32),
                   jax.ShapeDtypeStruct((b, n_t, 8, 128), jnp.float32)),
        grid_spec=pltpu.PrefetchScalarGridSpec(
            num_scalar_prefetch=0,
            grid=(b, n_t),
            in_specs=[
                pl.BlockSpec((1, c, tile), lambda i, j: (i, 0, j)),   # logits
                pl.BlockSpec((1, 1, tile), lambda i, j: (i, 0, j)),   # labels
                pl.BlockSpec((c, 1), lambda i, j: (0, 0)),            # alpha
            ],
            out_specs=(
                pl.BlockSpec((1, 1, 8, 128), lambda i, j: (i, j, 0, 0)),
                pl.BlockSpec((1, 1, 8, 128), lambda i, j: (i, j, 0, 0)),
            ),
        ),
        compiler_params=pltpu.CompilerParams(
            dimension_semantics=("parallel", "parallel"),
            vmem_limit_bytes=vmem_limit_bytes),
    )(x3, y3, alpha2)

    loss_sum = jnp.sum(part_sum[:, :, 0, 0])
    valid_cnt = jnp.sum(part_cnt[:, :, 0, 0])
    if reduction == "mean":
        # matches PyTorch module: returns 0.0 when every label is ignored
        return jnp.where(valid_cnt > 0, loss_sum / jnp.maximum(valid_cnt, 1.0), 0.0)
    return loss_sum


def _focal_loss_ref(x, y, alpha, *, gamma, ignore_index, reduction="mean"):
    """Pure-JAX reference mirroring the PyTorch module."""
    if x.ndim > 2:
        c = x.shape[1]
        perm = (0,) + tuple(range(2, x.ndim)) + (1,)
        x = jnp.transpose(x, perm).reshape(-1, c)
        y = y.reshape(-1)
    valid = y != ignore_index
    y_safe = jnp.where(valid, y, 0)
    log_p = jax.nn.log_softmax(x.astype(jnp.float32), axis=-1)
    log_pt = jnp.take_along_axis(log_p, y_safe[:, None], axis=-1)[:, 0]
    a_y = alpha[y_safe]
    ce = -a_y * log_pt
    pt = jnp.exp(log_pt)
    focal = jnp.power(1.0 - pt, gamma) if gamma != 0.0 else 1.0
    loss = jnp.where(valid, focal * ce, 0.0)
    if reduction == "mean":
        cnt = jnp.sum(valid)
        return jnp.where(cnt > 0, jnp.sum(loss) / jnp.maximum(cnt, 1), 0.0)
    return jnp.sum(loss)


if __name__ == "__main__":
    key = jax.random.PRNGKey(0)
    k_x, k_y, k_m, k_a, k_x2, k_y2, k_a2 = jax.random.split(key, 7)

    # --- test 1: segmentation-style NCHW input, gamma=2, mean reduction ---
    B, C, H, W = 2, 4, 16, 16
    gamma = 2.0
    ignore_index = -100
    x = jax.random.normal(k_x, (B, C, H, W), dtype=jnp.float32)
    y = jax.random.randint(k_y, (B, H, W), 0, C, dtype=jnp.int32)
    ignore_mask = jax.random.bernoulli(k_m, 0.1, (B, H, W))
    y = jnp.where(ignore_mask, jnp.int32(ignore_index), y)
    alpha = jax.random.uniform(k_a, (C,), minval=0.5, maxval=1.5, dtype=jnp.float32)

    out = jax.block_until_ready(
        focal_loss(x, y, alpha, gamma=gamma, reduction="mean",
                   ignore_index=ignore_index))
    ref = _focal_loss_ref(x, y, alpha, gamma=gamma, ignore_index=ignore_index,
                          reduction="mean")
    assert jnp.allclose(out, ref, rtol=2e-5, atol=1e-4), (out, ref)

    # --- test 2: 2-D (N, C) input, gamma=0, sum reduction, forced multi-tile
    #     (tiny block_bytes) to exercise partial-tile masking ---
    N2, C2 = 300, 5
    x2 = jax.random.normal(k_x2, (N2, C2), dtype=jnp.float32)
    y2 = jax.random.randint(k_y2, (N2,), 0, C2, dtype=jnp.int32)
    y2 = jnp.where(jax.random.bernoulli(k_y2, 0.15, (N2,)),
                   jnp.int32(ignore_index), y2)
    alpha2 = jax.random.uniform(k_a2, (C2,), minval=0.5, maxval=1.5,
                                dtype=jnp.float32)
    out2 = jax.block_until_ready(
        focal_loss(x2, y2, alpha2, gamma=0.0, reduction="sum",
                   ignore_index=ignore_index, block_bytes=1024))
    ref2 = _focal_loss_ref(x2, y2, alpha2, gamma=0.0,
                           ignore_index=ignore_index, reduction="sum")
    assert jnp.allclose(out2, ref2, rtol=2e-5, atol=1e-4), (out2, ref2)

    # --- test 3: every label ignored -> 0.0 (same shapes as test 1, cached compile) ---
    y_all_ign = jnp.full((B, H, W), ignore_index, dtype=jnp.int32)
    out3 = jax.block_until_ready(
        focal_loss(x, y_all_ign, alpha, gamma=gamma, reduction="mean",
                   ignore_index=ignore_index))
    assert jnp.allclose(out3, 0.0, atol=1e-7), out3

    print("KERNEL_OK")
</pallas_src>

<mosaic_0001>
module attributes {stable_mosaic.version = 11 : i64} {
  func.func @_focal_kernel(%arg0: i32, %arg1: i32, %arg2: memref<1x4x256xf32, #tpu.memory_space<vmem>>, %arg3: memref<1x1x256xi32, #tpu.memory_space<vmem>>, %arg4: memref<4x1xf32, #tpu.memory_space<vmem>>, %arg5: memref<1x1x8x128xf32, #tpu.memory_space<vmem>>, %arg6: memref<1x1x8x128xf32, #tpu.memory_space<vmem>>) attributes {dimension_semantics = [#tpu.dimension_semantics<parallel>, #tpu.dimension_semantics<parallel>], iteration_bounds = array<i64: 2, 1>, scalar_prefetch = 0 : i64, scratch_operands = 0 : i64, tpu.core_type = #tpu.core_type<tc>, window_params = [{transform_indices = @transform_0, window_bounds = array<i64: 1, 4, 256>}, {transform_indices = @transform_1, window_bounds = array<i64: 1, 1, 256>}, {pipeline_mode = #tpu.pipeline_mode<synchronous>, transform_indices = @transform_2, window_bounds = array<i64: 4, 1>}, {transform_indices = @transform_3, window_bounds = array<i64: 1, 1, 8, 128>}, {transform_indices = @transform_4, window_bounds = array<i64: 1, 1, 8, 128>}]} {
    %c0 = arith.constant 0 : index
    %c0_0 = arith.constant 0 : index
    %c0_1 = arith.constant 0 : index
    %0 = vector.load %arg2[%c0, %c0_0, %c0_1] : memref<1x4x256xf32, #tpu.memory_space<vmem>>, vector<1x4x256xf32>
    %1 = vector.shape_cast %0 : vector<1x4x256xf32> to vector<4x256xf32>
    %c0_2 = arith.constant 0 : index
    %c0_3 = arith.constant 0 : index
    %c0_4 = arith.constant 0 : index
    %2 = vector.load %arg3[%c0_2, %c0_3, %c0_4] : memref<1x1x256xi32, #tpu.memory_space<vmem>>, vector<1x1x256xi32>
    %3 = vector.shape_cast %2 : vector<1x1x256xi32> to vector<1x256xi32>
    %c0_5 = arith.constant 0 : index
    %c0_6 = arith.constant 0 : index
    %4 = vector.load %arg4[%c0_5, %c0_6] : memref<4x1xf32, #tpu.memory_space<vmem>>, vector<4x1xf32>
    %cst = arith.constant dense<0xFF800000> : vector<256xf32>
    %5 = vector.multi_reduction <maximumf>, %1, %cst [0] : vector<4x256xf32> to vector<256xf32>
    %6 = vector.shape_cast %5 : vector<256xf32> to vector<1x256xf32>
    %7 = vector.broadcast %6 : vector<1x256xf32> to vector<4x256xf32>
    %8 = arith.subf %1, %7 : vector<4x256xf32>
    %9 = math.exp %8 : vector<4x256xf32>
    %cst_7 = arith.constant dense<0.000000e+00> : vector<256xf32>
    %10 = vector.multi_reduction <add>, %9, %cst_7 [0] : vector<4x256xf32> to vector<256xf32>
    %11 = vector.shape_cast %10 : vector<256xf32> to vector<1x256xf32>
    %12 = math.log %11 : vector<1x256xf32>
    %13 = tpu.iota {dimensions = array<i32: 0>} : vector<4x256xi32>
    %14 = vector.broadcast %3 : vector<1x256xi32> to vector<4x256xi32>
    %15 = arith.cmpi eq, %13, %14 : vector<4x256xi32>
    %cst_8 = arith.constant 0.000000e+00 : f32
    %16 = vector.broadcast %cst_8 : f32 to vector<4x256xf32>
    %17 = arith.select %15, %8, %16 : vector<4x256xi1>, vector<4x256xf32>
    %cst_9 = arith.constant dense<0.000000e+00> : vector<256xf32>
    %18 = vector.multi_reduction <add>, %17, %cst_9 [0] : vector<4x256xf32> to vector<256xf32>
    %19 = vector.shape_cast %18 : vector<256xf32> to vector<1x256xf32>
    %20 = arith.subf %19, %12 : vector<1x256xf32>
    %cst_10 = arith.constant 0.000000e+00 : f32
    %21 = vector.shape_cast %4 : vector<4x1xf32> to vector<4x1xf32>
    %22 = vector.broadcast %21 : vector<4x1xf32> to vector<4x256xf32>
    %23 = vector.broadcast %cst_10 : f32 to vector<4x256xf32>
    %24 = arith.select %15, %22, %23 : vector<4x256xi1>, vector<4x256xf32>
    %cst_11 = arith.constant dense<0.000000e+00> : vector<256xf32>
    %25 = vector.multi_reduction <add>, %24, %cst_11 [0] : vector<4x256xf32> to vector<256xf32>
    %26 = vector.shape_cast %25 : vector<256xf32> to vector<1x256xf32>
    %c256_i32 = arith.constant 256 : i32
    %27 = arith.muli %arg1, %c256_i32 : i32
    %28 = tpu.iota {dimensions = array<i32: 1>} : vector<1x256xi32>
    %29 = vector.broadcast %27 : i32 to vector<1x256xi32>
    %30 = arith.addi %29, %28 : vector<1x256xi32>
    %c-100_i32 = arith.constant -100 : i32
    %31 = vector.broadcast %c-100_i32 : i32 to vector<1x256xi32>
    %32 = arith.cmpi ne, %3, %31 : vector<1x256xi32>
    %c256_i32_12 = arith.constant 256 : i32
    %33 = vector.broadcast %c256_i32_12 : i32 to vector<1x256xi32>
    %34 = arith.cmpi slt, %30, %33 : vector<1x256xi32>
    %35 = arith.andi %32, %34 : vector<1x256xi1>
    %cst_13 = arith.constant 0.000000e+00 : f32
    %36 = vector.broadcast %cst_13 : f32 to vector<1x256xf32>
    %37 = arith.subf %36, %26 : vector<1x256xf32>
    %38 = arith.mulf %37, %20 : vector<1x256xf32>
    %39 = math.exp %20 : vector<1x256xf32>
    %cst_14 = arith.constant 1.000000e+00 : f32
    %40 = vector.broadcast %cst_14 : f32 to vector<1x256xf32>
    %41 = arith.subf %40, %39 : vector<1x256xf32>
    %cst_15 = arith.constant 0.000000e+00 : f32
    %42 = vector.broadcast %cst_15 : f32 to vector<1x256xf32>
    %43 = arith.maximumf %41, %42 : vector<1x256xf32>
    %44 = arith.mulf %43, %43 : vector<1x256xf32>
    %45 = arith.mulf %44, %38 : vector<1x256xf32>
    %cst_16 = arith.constant 0.000000e+00 : f32
    %46 = vector.broadcast %cst_16 : f32 to vector<1x256xf32>
    %47 = arith.select %35, %45, %46 : vector<1x256xi1>, vector<1x256xf32>
    %48 = vector.shape_cast %47 : vector<1x256xf32> to vector<1x1x256xf32>
    %cst_17 = arith.constant dense<0.000000e+00> : vector<1xf32>
    %49 = vector.multi_reduction <add>, %48, %cst_17 [1, 2] : vector<1x1x256xf32> to vector<1xf32>
    %50 = vector.shape_cast %49 : vector<1xf32> to vector<1x1x1xf32>
    %51 = vector.extract %50[0, 0, 0] : f32 from vector<1x1x1xf32>
    %52 = vector.broadcast %51 : f32 to vector<1x1x8x128xf32>
    %c0_18 = arith.constant 0 : index
    %c0_19 = arith.constant 0 : index
    %c0_20 = arith.constant 0 : index
    %c0_21 = arith.constant 0 : index
    %53 = vector.load %arg5[%c0_18, %c0_19, %c0_20, %c0_21] : memref<1x1x8x128xf32, #tpu.memory_space<vmem>>, vector<1x1x8x128xf32>
    tpu.vector_store %arg5[%c0_18, %c0_19, %c0_20, %c0_21], %52 {strides = array<i32>} : memref<1x1x8x128xf32, #tpu.memory_space<vmem>>, vector<1x1x8x128xf32>,
    %54 = arith.extui %35 : vector<1x256xi1> to vector<1x256xi32>
    %55 = arith.sitofp %54 : vector<1x256xi32> to vector<1x256xf32>
    %56 = vector.shape_cast %55 : vector<1x256xf32> to vector<1x1x256xf32>
    %cst_22 = arith.constant dense<0.000000e+00> : vector<1xf32>
    %57 = vector.multi_reduction <add>, %56, %cst_22 [1, 2] : vector<1x1x256xf32> to vector<1xf32>
    %58 = vector.shape_cast %57 : vector<1xf32> to vector<1x1x1xf32>
    %59 = vector.extract %58[0, 0, 0] : f32 from vector<1x1x1xf32>
    %60 = vector.broadcast %59 : f32 to vector<1x1x8x128xf32>
    %c0_23 = arith.constant 0 : index
    %c0_24 = arith.constant 0 : index
    %c0_25 = arith.constant 0 : index
    %c0_26 = arith.constant 0 : index
    %61 = vector.load %arg6[%c0_23, %c0_24, %c0_25, %c0_26] : memref<1x1x8x128xf32, #tpu.memory_space<vmem>>, vector<1x1x8x128xf32>
    tpu.vector_store %arg6[%c0_23, %c0_24, %c0_25, %c0_26], %60 {strides = array<i32>} : memref<1x1x8x128xf32, #tpu.memory_space<vmem>>, vector<1x1x8x128xf32>,
    return
  }
  func.func @transform_0(%arg0: i32, %arg1: i32) -> (i32, i32, i32) {
    %c0_i32 = arith.constant 0 : i32
    %c0_i32_0 = arith.constant 0 : i32
    return %arg0, %c0_i32, %arg1 : i32, i32, i32
  }
  func.func @transform_1(%arg0: i32, %arg1: i32) -> (i32, i32, i32) {
    %c0_i32 = arith.constant 0 : i32
    %c0_i32_0 = arith.constant 0 : i32
    return %arg0, %c0_i32, %arg1 : i32, i32, i32
  }
  func.func @transform_2(%arg0: i32, %arg1: i32) -> (i32, i32) {
    %c0_i32 = arith.constant 0 : i32
    %c0_i32_0 = arith.constant 0 : i32
    %c0_i32_1 = arith.constant 0 : i32
    return %c0_i32, %c0_i32_0 : i32, i32
  }
  func.func @transform_3(%arg0: i32, %arg1: i32) -> (i32, i32, i32, i32) {
    %c0_i32 = arith.constant 0 : i32
    %c0_i32_0 = arith.constant 0 : i32
    %c0_i32_1 = arith.constant 0 : i32
    return %arg0, %arg1, %c0_i32, %c0_i32_0 : i32, i32, i32, i32
  }
  func.func @transform_4(%arg0: i32, %arg1: i32) -> (i32, i32, i32, i32) {
    %c0_i32 = arith.constant 0 : i32
    %c0_i32_0 = arith.constant 0 : i32
    %c0_i32_1 = arith.constant 0 : i32
    return %arg0, %arg1, %c0_i32, %c0_i32_0 : i32, i32, i32, i32
  }
}

</mosaic_0001>

<llo_original>
// kernel: tpu_custom_call.1
$region0: #{tpu_custom_call.1}
  #allocation0 [shape = 'u32[]', space=smem, size = 0x4, offset = 0x4, fixed_abs, tag = 'smem constant byte address 0x4 - core index']
  #allocation1 [shape = 'u32[144,128]{1,0:T(1,128)}', space=vmem, size = 0x12000, scoped, tag = 'internal scratch']
  %s0 = inlined_call_operand.hbm [shape: f32[2,4,256], index: 0, kind: input, shape index: {}]
  %s1 = inlined_call_operand.vmem [shape: s32[2,1,256], index: 1, kind: input, shape index: {}]
  %s2 = inlined_call_operand.vmem [shape: f32[4,1], index: 2, kind: input, shape index: {}]
  %s3 = inlined_call_operand.hbm [shape: f32[2,1,8,128], index: 3, kind: output, shape index: {0}]
  %s4 = inlined_call_operand.hbm [shape: f32[2,1,8,128], index: 4, kind: output, shape index: {1}]
  %5 = xla_tuple %s3, %s4
  %s6 = sld [smem:[#allocation0]]
  $region57: #{tpu_custom_call.1} parent=0
    _
  %s8 = ssub.s32 1, %s6
  %s9 = scalar_select 0, %s8, %s6
  $region1: #{tpu_custom_call.1} parent=0
    #allocation2 [shape = 'u8[8192]{0}', space=vmem, size = 0x2000, scoped, tag = 'input window, operand 0']
    #allocation3 [shape = 's32[2]{0}', space=sflag, size = 0x8, scoped, tag = 'scoped memory for tpu_custom_call.1']
    #allocation4 [shape = 's32[2]{0}', space=sflag, size = 0x8, scoped, tag = 'scoped memory for tpu_custom_call.1']
    #allocation5 [shape = 'u8[8192]{0}', space=vmem, size = 0x2000, scoped, tag = 'output window, operand 0']
    #allocation6 [shape = 'u8[8192]{0}', space=vmem, size = 0x2000, scoped, tag = 'output window, operand 1']
    #allocation7 [shape = 's32[2]{0}', space=sflag, size = 0x8, scoped, tag = 'scoped memory for tpu_custom_call.1']
    %10 = vsyncpa [#allocation3], 0
    %s11 = scalar_lea.sflag [#allocation3], 1
    %12 = vsyncpa %s11, 0
    %13 = vsyncpa [#allocation4], 0
    %s14 = scalar_lea.sflag [#allocation4], 1
    %15 = vsyncpa %s14, 0
    %16 = vsyncpa [#allocation7], 0
    %s17 = scalar_lea.sflag [#allocation7], 1
    %18 = vsyncpa %s17, 0
    loop: start=0, step=1, limit=4
    $region2: #{tpu_custom_call.1} parent=1 // loop_pre_header
      _
    $region3: #{tpu_custom_call.1} parent=1 // loop_header
      %s20 = sphi 0, %s24
      %p21 = scmp.ge.s32.totalorder %s20, 4
      %s27 = sphi 0, %s39
      %s28 = sphi 0, %s35
      %s29 = sphi 0, %s27
      %s30 = sphi 0, %s28
      %s31 = sphi 0, %s29
      %s32 = sphi 0, %s30
      %s44 = sphi 0, %s46
      %s47 = sphi 0, %s44
      %s48 = sphi 0, %s47
      %s64 = sphi 0, %s48
      %s72 = sphi 0, %s74
      %s75 = sphi 0, %s72
      %s76 = sphi 0, %s75
      %s92 = sphi 0, %s76
      %s96 = sphi 0, %s96
      %s98 = sphi 0, %s96
      %s99 = sphi 0, %s98
      %s113 = sphi 0, %s99
      %s121 = sphi 0, %s123
      %s124 = sphi 0, %s121
      %s125 = sphi 0, %s124
      %s141 = sphi 0, %s125
      %s149 = sphi 0, %s151
      %s152 = sphi 0, %s149
      %s153 = sphi 0, %s152
      %s169 = sphi 0, %s153
    $region4: #{tpu_custom_call.1} parent=1 // loop_header_branch
      %23 = sbr.rel (%p21) target = $region8
    $region5: #{tpu_custom_call.1} parent=1 // loop_body
      %s25 = ssub.s32 %s20, 1
      %s26 = ssub.s32 %s20, 2
      %s33 = sadd.s32 1, %s28
      %p34 = scmp.ge.s32.totalorder %s33, 1
      %s35 = scalar_select %p34, 0, %s33
      %s36 = sadd.s32 1, %s27
      %s37 = scalar_select %p34, %s36, %s27
      %p38 = scmp.ge.s32.totalorder %s37, 2
      %s39 = scalar_select %p38, 0, %s37
      %s40 = ssub.s32 %s27, %s39
      %s41 = ssub.s32 %s28, %s35
      %s42 = sor.u32 %s40, %s41
      %p43 = scmp.eq.s32.totalorder %s42, 0
      %s45 = sadd.s32 %s44, 1
      %s46 = scalar_select %p43, %s44, %s45
      %p49 = pneg %p43
      %p50 = scmp.eq.s32.totalorder %s20, 1
      %p51 = por %p49, %p50
      %p52 = scmp.ne.s32.totalorder %s44, %s47
      %p53 = scmp.eq.s32.totalorder %s20, 0
      %p54 = por %p52, %p53
      %p55 = scmp.ne.s32.totalorder %s44, %s47
      %p56 = scmp.eq.s32.totalorder %s25, 1
      %p57 = por %p55, %p56
      %p58 = scmp.ne.s32.totalorder %s47, %s48
      %p59 = scmp.eq.s32.totalorder %s25, 0
      %p60 = por %p58, %p59
      %p61 = scmp.ne.s32.totalorder %s47, %s48
      %p62 = scmp.eq.s32.totalorder %s26, 1
      %p63 = por %p61, %p62
      %p65 = scmp.ne.s32.totalorder %s48, %s64
      %p66 = scmp.eq.s32.totalorder %s26, 0
      %p67 = por %p65, %p66
      %s68 = ssub.s32 %s27, %s39
      %s69 = ssub.s32 %s28, %s35
      %s70 = sor.u32 %s68, %s69
      %p71 = scmp.eq.s32.totalorder %s70, 0
      %s73 = sadd.s32 %s72, 1
      %s74 = scalar_select %p71, %s72, %s73
      %p77 = pneg %p71
      %p78 = scmp.eq.s32.totalorder %s20, 1
      %p79 = por %p77, %p78
      %p80 = scmp.ne.s32.totalorder %s72, %s75
      %p81 = scmp.eq.s32.totalorder %s20, 0
      %p82 = por %p80, %p81
      %p83 = scmp.ne.s32.totalorder %s72, %s75
      %p84 = scmp.eq.s32.totalorder %s25, 1
      %p85 = por %p83, %p84
      %p86 = scmp.ne.s32.totalorder %s75, %s76
      %p87 = scmp.eq.s32.totalorder %s25, 0
      %p88 = por %p86, %p87
      %p89 = scmp.ne.s32.totalorder %s75, %s76
      %p90 = scmp.eq.s32.totalorder %s26, 1
      %p91 = por %p89, %p90
      %p93 = scmp.ne.s32.totalorder %s76, %s92
      %p94 = scmp.eq.s32.totalorder %s26, 0
      %p95 = por %p93, %p94
      %s97 = sadd.s32 %s96, 1
      %p100 = scmp.eq.s32.totalorder %s20, 1
      %p101 = scmp.ne.s32.totalorder %s96, %s98
      %p102 = scmp.eq.s32.totalorder %s20, 0
      %p103 = por %p101, %p102
      %p104 = scmp.ne.s32.totalorder %s96, %s98
      %p105 = scmp.eq.s32.totalorder %s25, 1
      %p106 = por %p104, %p105
      %p107 = scmp.ne.s32.totalorder %s98, %s99
      %p108 = scmp.eq.s32.totalorder %s25, 0
      %p109 = por %p107, %p108
      %p110 = scmp.ne.s32.totalorder %s98, %s99
      %p111 = scmp.eq.s32.totalorder %s26, 1
      %p112 = por %p110, %p111
      %p114 = scmp.ne.s32.totalorder %s99, %s113
      %p115 = scmp.eq.s32.totalorder %s26, 0
      %p116 = por %p114, %p115
      %s117 = ssub.s32 %s27, %s39
      %s118 = ssub.s32 %s28, %s35
      %s119 = sor.u32 %s117, %s118
      %p120 = scmp.eq.s32.totalorder %s119, 0
      %s122 = sadd.s32 %s121, 1
      %s123 = scalar_select %p120, %s121, %s122
      %p126 = pneg %p120
      %p127 = scmp.eq.s32.totalorder %s20, 1
      %p128 = por %p126, %p127
      %p129 = scmp.ne.s32.totalorder %s121, %s124
      %p130 = scmp.eq.s32.totalorder %s20, 0
      %p131 = por %p129, %p130
      %p132 = scmp.ne.s32.totalorder %s121, %s124
      %p133 = scmp.eq.s32.totalorder %s25, 1
      %p134 = por %p132, %p133
      %p135 = scmp.ne.s32.totalorder %s124, %s125
      %p136 = scmp.eq.s32.totalorder %s25, 0
      %p137 = por %p135, %p136
      %p138 = scmp.ne.s32.totalorder %s124, %s125
      %p139 = scmp.eq.s32.totalorder %s26, 1
      %p140 = por %p138, %p139
      %p142 = scmp.ne.s32.totalorder %s125, %s141
      %p143 = scmp.eq.s32.totalorder %s26, 0
      %p144 = por %p142, %p143
      %s145 = ssub.s32 %s27, %s39
      %s146 = ssub.s32 %s28, %s35
      %s147 = sor.u32 %s145, %s146
      %p148 = scmp.eq.s32.totalorder %s147, 0
      %s150 = sadd.s32 %s149, 1
      %s151 = scalar_select %p148, %s149, %s150
      %p154 = pneg %p148
      %p155 = scmp.eq.s32.totalorder %s20, 1
      %p156 = por %p154, %p155
      %p157 = scmp.ne.s32.totalorder %s149, %s152
      %p158 = scmp.eq.s32.totalorder %s20, 0
      %p159 = por %p157, %p158
      %p160 = scmp.ne.s32.totalorder %s149, %s152
      %p161 = scmp.eq.s32.totalorder %s25, 1
      %p162 = por %p160, %p161
      %p163 = scmp.ne.s32.totalorder %s152, %s153
      %p164 = scmp.eq.s32.totalorder %s25, 0
      %p165 = por %p163, %p164
      %p166 = scmp.ne.s32.totalorder %s152, %s153
      %p167 = scmp.eq.s32.totalorder %s26, 1
      %p168 = por %p166, %p167
      %p170 = scmp.ne.s32.totalorder %s153, %s169
      %p171 = scmp.eq.s32.totalorder %s26, 0
      %p172 = por %p170, %p171
      %p173 = scmp.le.s32.totalorder 1, %s20
      %p174 = scmp.lt.s32.totalorder %s20, 3
      %p175 = pnand %p173, %p174
      %p176 = pneg %p175
      // Predicated region
      $region9: #{tpu_custom_call.1} parent=5 // pred_check
        _
      $region10: #{tpu_custom_call.1} parent=5 // pred_check_branch
        %178 = sbr.rel (%p175) target = $region12
      $region11: #{tpu_custom_call.1} parent=5 // pred_region
        %s179 = ssub.s32 %s20, 1
        // Predicated region
        $region13: #{tpu_custom_call.1} parent=11 // pred_check
          %p180 = pneg %p109
        $region14: #{tpu_custom_call.1} parent=11 // pred_check_branch
          %182 = sbr.rel (%p180) target = $region16
        $region15: #{tpu_custom_call.1} parent=11 // pred_region
          _
        $region16: #{tpu_custom_call.1} parent=11 // pred_fallthru
          _
      $region12: #{tpu_custom_call.1} parent=5 // pred_fallthru
        _
      %p183 = scmp.lt.s32.totalorder %s20, 2
      // Predicated region
      $region17: #{tpu_custom_call.1} parent=5 // pred_check
        %p184 = pneg %p183
      $region18: #{tpu_custom_call.1} parent=5 // pred_check_branch
        %186 = sbr.rel (%p184) target = $region20
      $region19: #{tpu_custom_call.1} parent=5 // pred_region
        // Predicated region
        $region21: #{tpu_custom_call.1} parent=19 // pred_check
          %p187 = pneg %p54
        $region22: #{tpu_custom_call.1} parent=19 // pred_check_branch
          %189 = sbr.rel (%p187) target = $region24
        $region23: #{tpu_custom_call.1} parent=19 // pred_region
          %s190 = sand.u32 %s44, 1
          %s191 = scalar_lea.sflag [#allocation3], %s190
          %s192 = sand.u32 %s44, 1
          %s193 = smul.addr %s192, 8
          %s194 = scalar_lea.vmem [#allocation2], %s193
          %s195 = smul.u32 2, %s28
          %s197 = ssub.s32 128, 128
          %198 = vsyncadd %s191, %s197
          %s199 = smul.addr %s27, 2
          %s200 = sadd.s32 %s195, %s199
          %s201 = smul.addr %s200, 64
          %s202 = scalar_lea.hbm %s0, %s201
          %s204 = sshll.u32 %s194, 4
          %s205 = int_to_ptr.vmem [resolvable:$true] %s204
          %207 = dma.hbm_to_vmem [thread:$0]  %s202, 128, %s205, %s191
        $region24: #{tpu_custom_call.1} parent=19 // pred_fallthru
          _
        // Predicated region
        $region25: #{tpu_custom_call.1} parent=19 // pred_check
          %p208 = pneg %p82
        $region26: #{tpu_custom_call.1} parent=19 // pred_check_branch
          %210 = sbr.rel (%p208) target = $region28
        $region27: #{tpu_custom_call.1} parent=19 // pred_region
          %s211 = smul.u32 2, %s28
          %p212 = scmp.lt.s32.totalorder %s27, 1
          %s213 = scalar_select %p212, %s27, 1
          %p214 = scmp.lt.s32.totalorder %s211, 1
          %s215 = scalar_select %p214, %s211, 1
          %s216 = smul.addr %s213, 2
          %s217 = sadd.s32 %s215, %s216
          %s218 = scalar_lea.vmem %s1, %s217
          %s219 = smul.u32 2, %s28
        $region28: #{tpu_custom_call.1} parent=19 // pred_fallthru
          _
      $region20: #{tpu_custom_call.1} parent=5 // pred_fallthru
        _
      %p220 = scmp.le.s32.totalorder 1, %s20
      %p221 = scmp.lt.s32.totalorder %s20, 3
      %p222 = pnand %p220, %p221
      %p223 = pneg %p222
      // Predicated region
      $region29: #{tpu_custom_call.1} parent=5 // pred_check
        _
      $region30: #{tpu_custom_call.1} parent=5 // pred_check_branch
        %225 = sbr.rel (%p222) target = $region32
      $region31: #{tpu_custom_call.1} parent=5 // pred_region
        %s226 = ssub.s32 %s20, 1
        %s227 = sand.u32 %s47, 1
        %s228 = scalar_lea.sflag [#allocation3], %s227
        %s229 = sand.u32 %s47, 1
        %s230 = smul.addr %s229, 8
        %s231 = scalar_lea.vmem [#allocation2], %s230
        // Predicated region
        $region33: #{tpu_custom_call.1} parent=31 // pred_check
          %p232 = pneg %p60
        $region34: #{tpu_custom_call.1} parent=31 // pred_check_branch
          %234 = sbr.rel (%p232) target = $region36
        $region35: #{tpu_custom_call.1} parent=31 // pred_region
          %235 = dma.done %s228, 128
        $region36: #{tpu_custom_call.1} parent=31 // pred_fallthru
          _
        %s236 = sand.u32 %s47, 1
        %s237 = scalar_lea.sflag [#allocation3], %s236
        %s238 = sand.u32 %s47, 1
        %s239 = smul.addr %s238, 8
        %s240 = scalar_lea.vmem [#allocation2], %s239
        %p241 = pneg %p60
        %p242 = pneg %p57
        %s243 = smul.u32 2, %s30
        %p244 = scmp.lt.s32.totalorder %s29, 1
        %s245 = scalar_select %p244, %s29, 1
        %p246 = scmp.lt.s32.totalorder %s243, 1
        %s247 = scalar_select %p246, %s243, 1
        %s248 = smul.addr %s245, 2
        %s249 = sadd.s32 %s247, %s248
        %s250 = scalar_lea.vmem %s1, %s249
        %p251 = pneg %p88
        %p252 = pneg %p85
        %p253 = pneg %p109
        %p254 = pneg %p106
        %p255 = pneg %p137
        %p256 = pneg %p134
        %s257 = sand.u32 %s124, 1
        %s258 = scalar_lea.sflag [#allocation4], %s257
        %s259 = sand.u32 %s124, 1
        %s260 = smul.addr %s259, 8
        %s261 = scalar_lea.vmem [#allocation5], %s260
        %p262 = pneg %p165
        %p263 = pneg %p162
        %s264 = sand.u32 %s152, 1
        %s265 = scalar_lea.sflag [#allocation7], %s264
        %s266 = sand.u32 %s152, 1
        %s267 = smul.addr %s266, 8
        %s268 = scalar_lea.vmem [#allocation6], %s267
        %s269 = smul.u32 2, %s30
        %s270 = smul.u32 2, %s30
        %p271 = scmp.lt.s32.totalorder %s29, 1
        %s272 = scalar_select %p271, %s29, 1
        %p273 = scmp.lt.s32.totalorder %s270, 1
        %s274 = scalar_select %p273, %s270, 1
        %s275 = smul.addr %s272, 2
        %s276 = sadd.s32 %s274, %s275
        %s277 = scalar_lea.vmem %s1, %s276
        %s278 = smul.u32 2, %s30
        %v279 = vld [vmem:[%s231] sm:$0xff]
        %v280 = vld [vmem:[%s277] sm:$0x3]
        %v281 = vld [vmem:[%s2] sm:$0xf]
        %v283 = vcombine.high %v279, %v279
        %vm285 = vcmask 1043456
        %v286 = vsel %vm285, %v279, -inf
        %v287 = vrot.slane %v286, 4
        %v288 = vmax.f32 %v286, %v287
        %v289 = vrot.slane %v288, 2
        %v290 = vmax.f32 %v288, %v289
        %v291 = vrot.slane %v290, 1
        %v292 = vmax.f32 %v290, %v291
        %v293 = vsel %vm285, %v283, -inf
        %v294 = vrot.slane %v293, 4
        %v295 = vmax.f32 %v293, %v294
        %v296 = vrot.slane %v295, 2
        %v297 = vmax.f32 %v295, %v296
        %v298 = vrot.slane %v297, 1
        %v299 = vmax.f32 %v297, %v298
        %v302 = vcombine.low %v292, %v299
        %v304 = vsub.f32 %v279, %v302
        %v305 = vmul.f32 %v304, 1.442695
        %v306 = vpow.pop %v305
        %v308 = vcombine.high %v306, %v306
        %v310 = vsel %vm285, %v306, 0.0
        %v311 = vrot.slane %v310, 4
        %v312 = vadd.f32 %v310, %v311
        %v313 = vrot.slane %v312, 2
        %v314 = vadd.f32 %v312, %v313
        %v315 = vrot.slane %v314, 1
        %v316 = vadd.f32 %v314, %v315
        %v317 = vsel %vm285, %v308, 0.0
        %v318 = vrot.slane %v317, 4
        %v319 = vadd.f32 %v317, %v318
        %v320 = vrot.slane %v319, 2
        %v321 = vadd.f32 %v319, %v320
        %v322 = vrot.slane %v321, 1
        %v323 = vadd.f32 %v321, %v322
        %v324 = vlog2.pop %v316
        %v325 = vmul.f32 %v324, 0.6931472
        %v326 = vlog2.pop %v323
        %v327 = vmul.f32 %v326, 0.6931472
        %v328 = vlaneseq
        %v329 = vshrl.u32 %v328, 7
        %v330 = vlaneseq
        %v331 = vshrl.u32 %v330, 7
        %v332 = vsub.s32 0, %v331
        %v333 = vrot.slane %v280, %v332
        %v334 = vlaneseq
        %v335 = vshrl.u32 %v334, 7
        %v336 = vsub.s32 1, %v335
        %v337 = vrot.slane %v280, %v336
        %vm338 = vcmp.eq.s32.totalorder %v329, %v333
        %vm339 = vcmp.eq.s32.totalorder %v329, %v337
        %v341 = vcombine.high %v304, %v304
        %v343 = vsel %vm338, %v304, 0.0
        %v344 = vsel %vm339, %v341, 0.0
        %v345 = vsel %vm285, %v343, 0.0
        %v346 = vrot.slane %v345, 4
        %v347 = vadd.f32 %v345, %v346
        %v348 = vrot.slane %v347, 2
        %v349 = vadd.f32 %v347, %v348
        %v350 = vrot.slane %v349, 1
        %v351 = vadd.f32 %v349, %v350
        %v352 = vsel %vm285, %v344, 0.0
        %v353 = vrot.slane %v352, 4
        %v354 = vadd.f32 %v352, %v353
        %v355 = vrot.slane %v354, 2
        %v356 = vadd.f32 %v354, %v355
        %v357 = vrot.slane %v356, 1
        %v358 = vadd.f32 %v356, %v357
        %v359 = vsub.f32 %v351, %v325
        %v360 = vsub.f32 %v358, %v327
        %362 = vset.pattern.permute.xlu0 0
        %363 = vperm.xlu0 %362, %v281
        %v364 = vpop.permute.xlu0 %363
        %v366 = vsel %vm338, %v364, 0.0
        %v367 = vsel %vm339, %v364, 0.0
        %v368 = vsel %vm285, %v366, 0.0
        %v369 = vrot.slane %v368, 4
        %v370 = vadd.f32 %v368, %v369
        %v371 = vrot.slane %v370, 2
        %v372 = vadd.f32 %v370, %v371
        %v373 = vrot.slane %v372, 1
        %v374 = vadd.f32 %v372, %v373
        %v375 = vsel %vm285, %v367, 0.0
        %v376 = vrot.slane %v375, 4
        %v377 = vadd.f32 %v375, %v376
        %v378 = vrot.slane %v377, 2
        %v379 = vadd.f32 %v377, %v378
        %v380 = vrot.slane %v379, 1
        %v381 = vadd.f32 %v379, %v380
        %s382 = smul.u32 %s30, 256
        %v383 = vlaneseq
        %v384 = vand.u32 %v383, 127
        %v385 = vadd.s32 %v384, 128
        %v386 = vstv %s382
        %v387 = vadd.s32 %v386, %v384
        %v388 = vadd.s32 %v386, %v385
        %vm389 = vcmp.ne.s32.totalorder %v280, 4294967196
        %vm390 = vcmp.lt.s32.totalorder %v387, 256
        %vm391 = vcmp.lt.s32.totalorder %v388, 256
        %v392 = vsel %vm390, 1, 0
        %v393 = vsel %vm391, 1, 0
        %v394 = vcombine.low %v392, %v393
        %v396 = vunpack.c.l.s4 1966171168
        %v397 = vunpack.c.0.s8 %v396
        %v398 = vlaneseq
        %v399 = vshrl.u32 %v398, 7
        %v400 = vsub.s32 %v397, %v399
        %v401 = vrot.slane %v394, %v400
        %v403 = vunpack.c.l.s4 1966171168
        %v404 = vunpack.c.0.s8 %v403
        %v405 = vlaneseq
        %v406 = vshrl.u32 %v405, 7
        %v407 = vsub.s32 %v404, %v406
        %v408 = vrot.slane %v401, %v407
        %vm409 = vcmp.ne.s32.totalorder %v408, 0
        %vm410 = vmand %vm389, %vm409
        %v411 = vsub.f32 0.0, %v374
        %v412 = vsub.f32 0.0, %v381
        %v413 = vmul.f32 %v411, %v359
        %v414 = vmul.f32 %v412, %v360
        %v415 = vmul.f32 %v359, 1.442695
        %v416 = vpow.pop %v415
        %v417 = vmul.f32 %v360, 1.442695
        %v418 = vpow.pop %v417
        %v419 = vsub.f32 1.0, %v416
        %v420 = vsub.f32 1.0, %v418
        %v421 = vmax.f32 %v419, 0.0
        %v422 = vmax.f32 %v420, 0.0
        %v423 = vmul.f32 %v421, %v421
        %v424 = vmul.f32 %v422, %v422
        %v425 = vmul.f32 %v423, %v413
        %v426 = vmul.f32 %v424, %v414
        %v429 = vcombine.low %v425, %v426
        %v431 = vunpack.c.l.s4 1966171168
        %v432 = vunpack.c.0.s8 %v431
        %v433 = vlaneseq
        %v434 = vshrl.u32 %v433, 7
        %v435 = vsub.s32 %v432, %v434
        %v436 = vrot.slane %v429, %v435
        %v438 = vunpack.c.l.s4 1966171168
        %v439 = vunpack.c.0.s8 %v438
        %v440 = vlaneseq
        %v441 = vshrl.u32 %v440, 7
        %v442 = vsub.s32 %v439, %v441
        %v443 = vrot.slane %v436, %v442
        %v445 = vsel %vm410, %v443, 0.0
        %v447 = vlaneseq
        %v448 = vshrl.u32 %v447, 7
        %v449 = vsub.s32 0, %v448
        %v450 = vrot.slane %v445, %v449
        %v451 = vlaneseq
        %v452 = vshrl.u32 %v451, 7
        %v453 = vsub.s32 1, %v452
        %v454 = vrot.slane %v445, %v453
        %vm457 = vcmask 1040384
        %v458 = vsel %vm457, %v450, 0.0
        %v459 = vsel %vm457, %v454, 0.0
        %v460 = vadd.f32 %v458, %v459
        %461 = vadd.xlane.f32.xlu0 %v460
        %v462 = vpop.xlane.xlu0 %461
        %v463 = vrot.slane %v462, 4
        %v464 = vadd.f32 %v462, %v463
        %v465 = vrot.slane %v464, 2
        %v466 = vadd.f32 %v464, %v465
        %v467 = vrot.slane %v466, 1
        %v468 = vadd.f32 %v466, %v467
        %s469 = vtos %v468
        %v470 = vstv %s469
        %471 = vst [vmem:[%s261] sm:$0xff] %v470
        %v472 = vsel %vm410, 1, 0
        %v473 = vcvt.s32.f32 %v472
        %v475 = vlaneseq
        %v476 = vshrl.u32 %v475, 7
        %v477 = vsub.s32 0, %v476
        %v478 = vrot.slane %v473, %v477
        %v479 = vlaneseq
        %v480 = vshrl.u32 %v479, 7
        %v481 = vsub.s32 1, %v480
        %v482 = vrot.slane %v473, %v481
        %v485 = vsel %vm457, %v478, 0.0
        %v486 = vsel %vm457, %v482, 0.0
        %v487 = vadd.f32 %v485, %v486
        %488 = vadd.xlane.f32.xlu0 %v487
        %v489 = vpop.xlane.xlu0 %488
        %v490 = vrot.slane %v489, 4
        %v491 = vadd.f32 %v489, %v490
        %v492 = vrot.slane %v491, 2
        %v493 = vadd.f32 %v491, %v492
        %v494 = vrot.slane %v493, 1
        %v495 = vadd.f32 %v493, %v494
        %s496 = vtos %v495
        %v497 = vstv %s496
        %498 = vst [vmem:[%s268] sm:$0xff] %v497
        %s499 = sand.u32 %s124, 1
        %s500 = scalar_lea.sflag [#allocation4], %s499
        %s501 = sand.u32 %s124, 1
        %s502 = smul.addr %s501, 8
        %s503 = scalar_lea.vmem [#allocation5], %s502
        %s504 = sand.u32 %s152, 1
        %s505 = scalar_lea.sflag [#allocation7], %s504
        %s506 = sand.u32 %s152, 1
        %s507 = smul.addr %s506, 8
        %s508 = scalar_lea.vmem [#allocation6], %s507
        // Predicated region
        $region37: #{tpu_custom_call.1} parent=31 // pred_check
          %p509 = pneg %p134
        $region38: #{tpu_custom_call.1} parent=31 // pred_check_branch
          %511 = sbr.rel (%p509) target = $region40
        $region39: #{tpu_custom_call.1} parent=31 // pred_region
          %s513 = ssub.s32 128, 128
          %514 = vsyncadd %s500, %s513
          %s515 = sadd.s32 %s30, %s29
          %s516 = smul.addr %s515, 128
          %s517 = scalar_lea.hbm %s3, %s516
          %s519 = sshll.u32 %s503, 4
          %s520 = int_to_ptr.vmem [resolvable:$true] %s519
          %522 = dma.vmem_to_hbm [thread:$0]  %s520, 128, %s517, %s500
        $region40: #{tpu_custom_call.1} parent=31 // pred_fallthru
          _
        // Predicated region
        $region41: #{tpu_custom_call.1} parent=31 // pred_check
          %p523 = pneg %p162
        $region42: #{tpu_custom_call.1} parent=31 // pred_check_branch
          %525 = sbr.rel (%p523) target = $region44
        $region43: #{tpu_custom_call.1} parent=31 // pred_region
          %s527 = ssub.s32 128, 128
          %528 = vsyncadd %s505, %s527
          %s529 = sadd.s32 %s30, %s29
          %s530 = smul.addr %s529, 128
          %s531 = scalar_lea.hbm %s4, %s530
          %s533 = sshll.u32 %s508, 4
          %s534 = int_to_ptr.vmem [resolvable:$true] %s533
          %536 = dma.vmem_to_hbm [thread:$0]  %s534, 128, %s531, %s505
        $region44: #{tpu_custom_call.1} parent=31 // pred_fallthru
          _
      $region32: #{tpu_custom_call.1} parent=5 // pred_fallthru
        _
      %p537 = scmp.le.s32.totalorder 2, %s20
      // Predicated region
      $region45: #{tpu_custom_call.1} parent=5 // pred_check
        %p538 = pneg %p537
      $region46: #{tpu_custom_call.1} parent=5 // pred_check_branch
        %540 = sbr.rel (%p538) target = $region48
      $region47: #{tpu_custom_call.1} parent=5 // pred_region
        %s541 = ssub.s32 %s20, 2
        // Predicated region
        $region49: #{tpu_custom_call.1} parent=47 // pred_check
          %p542 = pneg %p140
        $region50: #{tpu_custom_call.1} parent=47 // pred_check_branch
          %544 = sbr.rel (%p542) target = $region52
        $region51: #{tpu_custom_call.1} parent=47 // pred_region
          %s545 = sand.u32 %s125, 1
          %s546 = scalar_lea.sflag [#allocation4], %s545
          %s547 = sand.u32 %s125, 1
          %s548 = smul.addr %s547, 8
          %s549 = scalar_lea.vmem [#allocation5], %s548
          %550 = dma.done %s546, 128
        $region52: #{tpu_custom_call.1} parent=47 // pred_fallthru
          _
        // Predicated region
        $region53: #{tpu_custom_call.1} parent=47 // pred_check
          %p551 = pneg %p168
        $region54: #{tpu_custom_call.1} parent=47 // pred_check_branch
          %553 = sbr.rel (%p551) target = $region56
        $region55: #{tpu_custom_call.1} parent=47 // pred_region
          %s554 = sand.u32 %s153, 1
          %s555 = scalar_lea.sflag [#allocation7], %s554
          %s556 = sand.u32 %s153, 1
          %s557 = smul.addr %s556, 8
          %s558 = scalar_lea.vmem [#allocation6], %s557
          %559 = dma.done %s555, 128
        $region56: #{tpu_custom_call.1} parent=47 // pred_fallthru
          _
      $region48: #{tpu_custom_call.1} parent=5 // pred_fallthru
        _
    $region6: #{tpu_custom_call.1} parent=1 // loop_footer
      %s24 = sadd.s32 1, %s20
    $region7: #{tpu_custom_call.1} parent=1 // loop_footer_branch
      %19 = sbr.rel target = $region3
    $region8: #{tpu_custom_call.1} parent=1 // loop_exit
      _
    %560 = vsyncpa [#allocation3], 1
    %s561 = scalar_lea.sflag [#allocation3], 1
    %562 = vsyncpa %s561, 1
    %563 = vsyncpa [#allocation4], 1
    %s564 = scalar_lea.sflag [#allocation4], 1
    %565 = vsyncpa %s564, 1
    %566 = vsyncpa [#allocation7], 1
    %s567 = scalar_lea.sflag [#allocation7], 1
    %568 = vsyncpa %s567, 1

</llo_original>
